<compile_context>
chip_gen: v7x
topology: tpu7x:2x2x1
jax: 0.10.0
libtpu: 0.0.40
codegen_flags: <defaults>
</compile_context>

<pallas_src>
import functools

import jax
import jax.numpy as jnp
from jax.experimental import pallas as pl
from jax.experimental.pallas import tpu as pltpu

LEAK = 0.2       # F.leaky_relu(x, 0.2) used by LinearOutputStack blocks
LN_EPS = 1e-5    # torch.nn.LayerNorm default eps
LANE = 128       # TPU lane width


def _bf16_dot(a, w, b):
    """bf16-operand matmul on the MXU with f32 accumulation, + bias (f32)."""
    return jnp.dot(a.astype(jnp.bfloat16), w.astype(jnp.bfloat16),
                   preferred_element_type=jnp.float32) + b


def _fused_layer_norm(h, gamma, beta):
    """Single-pass LayerNorm: biased var via E[x^2] - E[x]^2 (matches torch)."""
    inv_c = 1.0 / h.shape[-1]
    s1 = jnp.sum(h, axis=-1, keepdims=True)
    s2 = jnp.sum(h * h, axis=-1, keepdims=True)
    mu = s1 * inv_c
    var = s2 * inv_c - mu * mu
    return (h - mu) * jax.lax.rsqrt(var + LN_EPS) * gamma + beta


def generate_mix_kernel(x_ref, w_in_ref, b_in_ref,
                        w_blk_ref, b_blk_ref,
                        w_out_ref, b_out_ref,
                        gamma_ref, beta_ref,
                        o_ref):
    """One (TB, latent_dim) batch tile -> (TB, padded_out) logits tile, all in VMEM."""
    x = x_ref[...]
    # input projection: latent_dim -> channels
    h = _bf16_dot(x, w_in_ref[...], b_in_ref[...])

    gamma = gamma_ref[...]
    beta = beta_ref[...]
    # 3 core blocks: Linear -> leaky_relu(0.2) -> shared LayerNorm((channels,))
    for i in range(3):                                   # static unroll
        h = _bf16_dot(h, w_blk_ref[i], b_blk_ref[i])
        h = jnp.where(h > 0, h, LEAK * h)                # f32 elementwise
        h = _fused_layer_norm(h, gamma, beta)            # f32 reduce/normalize

    # output projection: channels -> padded mixer_channels (lane-dense store)
    y = _bf16_dot(h, w_out_ref[...], b_out_ref[...])
    o_ref[...] = y.astype(o_ref.dtype)


def _const_spec(shape):
    """Weight-resident BlockSpec: full array, constant block index (DMA'd once)."""
    nd = len(shape)
    return pl.BlockSpec(shape, lambda i, _nd=nd: (0,) * _nd)


@functools.partial(jax.jit, static_argnames=("encoding_channels", "block_b", "return_logits"))
def generate_mix(x, params, encoding_channels, block_b=8, return_logits=False):
    """Pallas kernel over a batch grid, then the view + softmax glue in plain JAX."""
    B, latent_dim = x.shape
    channels = params["w_in"].shape[1]
    mixer_channels = params["w_out"].shape[1]

    # pad batch to a multiple of the batch tile (sublane-aligned)
    n_tiles = pl.cdiv(B, block_b)
    b_pad = n_tiles * block_b
    x_p = jnp.pad(x, ((0, b_pad - B), (0, 0))) if b_pad != B else x

    # pad the output projection to a lane-dense width (multiple of 128)
    out_cols = max(LANE, pl.cdiv(mixer_channels, LANE) * LANE)
    w_out_p = jnp.pad(params["w_out"], ((0, 0), (0, out_cols - mixer_channels)))
    b_out_p = jnp.pad(params["b_out"], ((0, 0), (0, out_cols - mixer_channels)))

    args = (x_p,
            params["w_in"], params["b_in"],
            params["w_blk"], params["b_blk"],
            w_out_p, b_out_p,
            params["gamma"], params["beta"])

    in_specs = [pl.BlockSpec((block_b, latent_dim), lambda i: (i, 0))]  # batch-tiled activations
    in_specs += [_const_spec(a.shape) for a in args[1:]]                # VMEM-resident params

    logits_padded = pl.pallas_call(
        generate_mix_kernel,
        out_shape=jax.ShapeDtypeStruct((b_pad, out_cols), jnp.float32),
        grid=(n_tiles,),
        in_specs=in_specs,
        out_specs=pl.BlockSpec((block_b, out_cols), lambda i: (i, 0)),
        compiler_params=pltpu.CompilerParams(
            dimension_semantics=("parallel",)),        # 2-TC sharding on v7x; harmless on v5e/v6e
    )(*args)

    logits = logits_padded[:B, :mixer_channels]

    # glue: x.view(-1, encoding_channels, 1); softmax over the trailing (size-1) axis
    mix = logits.reshape(-1, encoding_channels, 1)
    mix = jax.nn.softmax(mix, axis=-1)   # constant 1.0 (size-1 axis) — kept for semantic fidelity
    if return_logits:
        return mix, logits
    return mix


def generate_mix_reference(x, params, encoding_channels):
    """Pure-JAX reference using the same bf16-operand math (for correctness check)."""
    h = _bf16_dot(x, params["w_in"], params["b_in"])
    for i in range(3):
        h = _bf16_dot(h, params["w_blk"][i], params["b_blk"][i])
        h = jnp.where(h > 0, h, LEAK * h)
        h = _fused_layer_norm(h, params["gamma"], params["beta"])
    logits = _bf16_dot(h, params["w_out"], params["b_out"])
    y = logits.reshape(-1, encoding_channels, 1)
    return jax.nn.softmax(y, axis=-1), logits


def init_params(key, latent_dim, channels, mixer_channels):
    """Deterministic synthetic init mimicking torch defaults (U(-1/sqrt(fan_in), +))."""
    def linear(k, fan_in, fan_out):
        k1, k2 = jax.random.split(k)
        bound = 1.0 / float(fan_in) ** 0.5
        w = jax.random.uniform(k1, (fan_in, fan_out), jnp.float32, -bound, bound)
        b = jax.random.uniform(k2, (1, fan_out), jnp.float32, -bound, bound)
        return w, b

    k_in, k0, k1, k2, k_out = jax.random.split(key, 5)
    params = {}
    params["w_in"], params["b_in"] = linear(k_in, latent_dim, channels)
    w0, b0 = linear(k0, channels, channels)
    w1, b1 = linear(k1, channels, channels)
    w2, b2 = linear(k2, channels, channels)
    params["w_blk"] = jnp.stack([w0, w1, w2])        # (3, C, C)
    params["b_blk"] = jnp.stack([b0, b1, b2])        # (3, 1, C)
    params["w_out"], params["b_out"] = linear(k_out, channels, mixer_channels)
    # shared LayerNorm((channels,)) params: default gamma=1, beta=0
    params["gamma"] = jnp.ones((1, channels), jnp.float32)
    params["beta"] = jnp.zeros((1, channels), jnp.float32)
    return params


if __name__ == "__main__":
    # small shapes consistent with the module
    B = 16
    TB = 8                      # batch tile (f32 sublane multiple)
    latent_dim = 16
    channels = 32
    mixer_channels = 2
    encoding_channels = 8       # B * mixer_channels must be divisible by this

    key = jax.random.PRNGKey(0)
    k_x, k_p = jax.random.split(key)
    x = jax.random.normal(k_x, (B, latent_dim), jnp.float32)
    params = init_params(k_p, latent_dim, channels, mixer_channels)

    out, logits = generate_mix(x, params, encoding_channels, block_b=TB, return_logits=True)
    out = jax.block_until_ready(out)

    ref_out, ref_logits = generate_mix_reference(x, params, encoding_channels)
    assert out.shape == (B * mixer_channels // encoding_channels, encoding_channels, 1), out.shape
    # pre-softmax logits (the real compute) — tolerance accounts for bf16 MXU operands
    assert jnp.allclose(logits, ref_logits, atol=1e-2, rtol=1e-2), \
        float(jnp.max(jnp.abs(logits - ref_logits)))
    # final mix: softmax over a size-1 axis is identically 1.0
    assert jnp.allclose(out, ref_out, atol=1e-6), float(jnp.max(jnp.abs(out - ref_out)))

    print("KERNEL_OK")
</pallas_src>

<mosaic_0001>
module attributes {stable_mosaic.version = 11 : i64} {
  func.func @generate_mix_kernel(%arg0: i32, %arg1: memref<8x16xf32, #tpu.memory_space<vmem>>, %arg2: memref<16x32xf32, #tpu.memory_space<vmem>>, %arg3: memref<1x32xf32, #tpu.memory_space<vmem>>, %arg4: memref<3x32x32xf32, #tpu.memory_space<vmem>>, %arg5: memref<3x1x32xf32, #tpu.memory_space<vmem>>, %arg6: memref<32x128xf32, #tpu.memory_space<vmem>>, %arg7: memref<1x128xf32, #tpu.memory_space<vmem>>, %arg8: memref<1x32xf32, #tpu.memory_space<vmem>>, %arg9: memref<1x32xf32, #tpu.memory_space<vmem>>, %arg10: memref<8x128xf32, #tpu.memory_space<vmem>>) attributes {dimension_semantics = [#tpu.dimension_semantics<parallel>], iteration_bounds = array<i64: 2>, scalar_prefetch = 0 : i64, scratch_operands = 0 : i64, tpu.core_type = #tpu.core_type<tc>, window_params = [{transform_indices = @transform_0, window_bounds = array<i64: 8, 16>}, {pipeline_mode = #tpu.pipeline_mode<synchronous>, transform_indices = @transform_1, window_bounds = array<i64: 16, 32>}, {pipeline_mode = #tpu.pipeline_mode<synchronous>, transform_indices = @transform_2, window_bounds = array<i64: 1, 32>}, {pipeline_mode = #tpu.pipeline_mode<synchronous>, transform_indices = @transform_3, window_bounds = array<i64: 3, 32, 32>}, {pipeline_mode = #tpu.pipeline_mode<synchronous>, transform_indices = @transform_4, window_bounds = array<i64: 3, 1, 32>}, {pipeline_mode = #tpu.pipeline_mode<synchronous>, transform_indices = @transform_5, window_bounds = array<i64: 32, 128>}, {pipeline_mode = #tpu.pipeline_mode<synchronous>, transform_indices = @transform_6, window_bounds = array<i64: 1, 128>}, {pipeline_mode = #tpu.pipeline_mode<synchronous>, transform_indices = @transform_7, window_bounds = array<i64: 1, 32>}, {pipeline_mode = #tpu.pipeline_mode<synchronous>, transform_indices = @transform_8, window_bounds = array<i64: 1, 32>}, {transform_indices = @transform_9, window_bounds = array<i64: 8, 128>}]} {
    %c0 = arith.constant 0 : index
    %c0_0 = arith.constant 0 : index
    %0 = vector.load %arg1[%c0, %c0_0] : memref<8x16xf32, #tpu.memory_space<vmem>>, vector<8x16xf32>
    %c0_1 = arith.constant 0 : index
    %c0_2 = arith.constant 0 : index
    %1 = vector.load %arg2[%c0_1, %c0_2] : memref<16x32xf32, #tpu.memory_space<vmem>>, vector<16x32xf32>
    %c0_3 = arith.constant 0 : index
    %c0_4 = arith.constant 0 : index
    %2 = vector.load %arg3[%c0_3, %c0_4] : memref<1x32xf32, #tpu.memory_space<vmem>>, vector<1x32xf32>
    %3 = arith.truncf %0 : vector<8x16xf32> to vector<8x16xbf16>
    %4 = arith.truncf %1 : vector<16x32xf32> to vector<16x32xbf16>
    %cst = arith.constant dense<0.000000e+00> : vector<8x32xf32>
    %5 = tpu.matmul %3, %4, %cst {dimension_numbers = #tpu.dot_dimension_numbers<[1], [0], [0], [1], [0, 0, 1, 1], [], []>} : vector<8x16xbf16>, vector<16x32xbf16>, vector<8x32xf32> -> vector<8x32xf32>
    %6 = vector.broadcast %2 : vector<1x32xf32> to vector<8x32xf32>
    %7 = arith.addf %5, %6 : vector<8x32xf32>
    %c0_5 = arith.constant 0 : index
    %c0_6 = arith.constant 0 : index
    %8 = vector.load %arg8[%c0_5, %c0_6] : memref<1x32xf32, #tpu.memory_space<vmem>>, vector<1x32xf32>
    %c0_7 = arith.constant 0 : index
    %c0_8 = arith.constant 0 : index
    %9 = vector.load %arg9[%c0_7, %c0_8] : memref<1x32xf32, #tpu.memory_space<vmem>>, vector<1x32xf32>
    %c0_9 = arith.constant 0 : index
    %c0_10 = arith.constant 0 : index
    %c0_11 = arith.constant 0 : index
    %10 = vector.load %arg4[%c0_9, %c0_10, %c0_11] : memref<3x32x32xf32, #tpu.memory_space<vmem>>, vector<1x32x32xf32>
    %11 = vector.shape_cast %10 : vector<1x32x32xf32> to vector<32x32xf32>
    %c0_12 = arith.constant 0 : index
    %c0_13 = arith.constant 0 : index
    %c0_14 = arith.constant 0 : index
    %12 = vector.load %arg5[%c0_12, %c0_13, %c0_14] : memref<3x1x32xf32, #tpu.memory_space<vmem>>, vector<1x1x32xf32>
    %13 = vector.shape_cast %12 : vector<1x1x32xf32> to vector<1x32xf32>
    %14 = arith.truncf %7 : vector<8x32xf32> to vector<8x32xbf16>
    %15 = arith.truncf %11 : vector<32x32xf32> to vector<32x32xbf16>
    %cst_15 = arith.constant dense<0.000000e+00> : vector<8x32xf32>
    %16 = tpu.matmul %14, %15, %cst_15 {dimension_numbers = #tpu.dot_dimension_numbers<[1], [0], [0], [1], [0, 0, 1, 1], [], []>} : vector<8x32xbf16>, vector<32x32xbf16>, vector<8x32xf32> -> vector<8x32xf32>
    %17 = vector.broadcast %13 : vector<1x32xf32> to vector<8x32xf32>
    %18 = arith.addf %16, %17 : vector<8x32xf32>
    %cst_16 = arith.constant 0.000000e+00 : f32
    %19 = vector.broadcast %cst_16 : f32 to vector<8x32xf32>
    %20 = arith.cmpf ogt, %18, %19 : vector<8x32xf32>
    %cst_17 = arith.constant 2.000000e-01 : f32
    %21 = vector.broadcast %cst_17 : f32 to vector<8x32xf32>
    %22 = arith.mulf %21, %18 : vector<8x32xf32>
    %23 = arith.select %20, %18, %22 : vector<8x32xi1>, vector<8x32xf32>
    %cst_18 = arith.constant dense<0.000000e+00> : vector<8xf32>
    %24 = vector.multi_reduction <add>, %23, %cst_18 [1] : vector<8x32xf32> to vector<8xf32>
    %25 = vector.shape_cast %24 : vector<8xf32> to vector<8x1xf32>
    %26 = arith.mulf %23, %23 : vector<8x32xf32>
    %cst_19 = arith.constant dense<0.000000e+00> : vector<8xf32>
    %27 = vector.multi_reduction <add>, %26, %cst_19 [1] : vector<8x32xf32> to vector<8xf32>
    %28 = vector.shape_cast %27 : vector<8xf32> to vector<8x1xf32>
    %cst_20 = arith.constant 3.125000e-02 : f32
    %29 = vector.broadcast %cst_20 : f32 to vector<8x1xf32>
    %30 = arith.mulf %25, %29 : vector<8x1xf32>
    %cst_21 = arith.constant 3.125000e-02 : f32
    %31 = vector.broadcast %cst_21 : f32 to vector<8x1xf32>
    %32 = arith.mulf %28, %31 : vector<8x1xf32>
    %33 = arith.mulf %30, %30 : vector<8x1xf32>
    %34 = arith.subf %32, %33 : vector<8x1xf32>
    %35 = vector.broadcast %30 : vector<8x1xf32> to vector<8x32xf32>
    %36 = arith.subf %23, %35 : vector<8x32xf32>
    %cst_22 = arith.constant 9.99999974E-6 : f32
    %37 = vector.broadcast %cst_22 : f32 to vector<8x1xf32>
    %38 = arith.addf %34, %37 : vector<8x1xf32>
    %39 = math.rsqrt %38 : vector<8x1xf32>
    %40 = vector.broadcast %39 : vector<8x1xf32> to vector<8x32xf32>
    %41 = arith.mulf %36, %40 : vector<8x32xf32>
    %42 = vector.broadcast %8 : vector<1x32xf32> to vector<8x32xf32>
    %43 = arith.mulf %41, %42 : vector<8x32xf32>
    %44 = vector.broadcast %9 : vector<1x32xf32> to vector<8x32xf32>
    %45 = arith.addf %43, %44 : vector<8x32xf32>
    %c1 = arith.constant 1 : index
    %c0_23 = arith.constant 0 : index
    %c0_24 = arith.constant 0 : index
    %46 = vector.load %arg4[%c1, %c0_23, %c0_24] : memref<3x32x32xf32, #tpu.memory_space<vmem>>, vector<1x32x32xf32>
    %47 = vector.shape_cast %46 : vector<1x32x32xf32> to vector<32x32xf32>
    %c1_25 = arith.constant 1 : index
    %c0_26 = arith.constant 0 : index
    %c0_27 = arith.constant 0 : index
    %48 = vector.load %arg5[%c1_25, %c0_26, %c0_27] : memref<3x1x32xf32, #tpu.memory_space<vmem>>, vector<1x1x32xf32>
    %49 = vector.shape_cast %48 : vector<1x1x32xf32> to vector<1x32xf32>
    %50 = arith.truncf %45 : vector<8x32xf32> to vector<8x32xbf16>
    %51 = arith.truncf %47 : vector<32x32xf32> to vector<32x32xbf16>
    %cst_28 = arith.constant dense<0.000000e+00> : vector<8x32xf32>
    %52 = tpu.matmul %50, %51, %cst_28 {dimension_numbers = #tpu.dot_dimension_numbers<[1], [0], [0], [1], [0, 0, 1, 1], [], []>} : vector<8x32xbf16>, vector<32x32xbf16>, vector<8x32xf32> -> vector<8x32xf32>
    %53 = vector.broadcast %49 : vector<1x32xf32> to vector<8x32xf32>
    %54 = arith.addf %52, %53 : vector<8x32xf32>
    %cst_29 = arith.constant 0.000000e+00 : f32
    %55 = vector.broadcast %cst_29 : f32 to vector<8x32xf32>
    %56 = arith.cmpf ogt, %54, %55 : vector<8x32xf32>
    %cst_30 = arith.constant 2.000000e-01 : f32
    %57 = vector.broadcast %cst_30 : f32 to vector<8x32xf32>
    %58 = arith.mulf %57, %54 : vector<8x32xf32>
    %59 = arith.select %56, %54, %58 : vector<8x32xi1>, vector<8x32xf32>
    %cst_31 = arith.constant dense<0.000000e+00> : vector<8xf32>
    %60 = vector.multi_reduction <add>, %59, %cst_31 [1] : vector<8x32xf32> to vector<8xf32>
    %61 = vector.shape_cast %60 : vector<8xf32> to vector<8x1xf32>
    %62 = arith.mulf %59, %59 : vector<8x32xf32>
    %cst_32 = arith.constant dense<0.000000e+00> : vector<8xf32>
    %63 = vector.multi_reduction <add>, %62, %cst_32 [1] : vector<8x32xf32> to vector<8xf32>
    %64 = vector.shape_cast %63 : vector<8xf32> to vector<8x1xf32>
    %cst_33 = arith.constant 3.125000e-02 : f32
    %65 = vector.broadcast %cst_33 : f32 to vector<8x1xf32>
    %66 = arith.mulf %61, %65 : vector<8x1xf32>
    %cst_34 = arith.constant 3.125000e-02 : f32
    %67 = vector.broadcast %cst_34 : f32 to vector<8x1xf32>
    %68 = arith.mulf %64, %67 : vector<8x1xf32>
    %69 = arith.mulf %66, %66 : vector<8x1xf32>
    %70 = arith.subf %68, %69 : vector<8x1xf32>
    %71 = vector.broadcast %66 : vector<8x1xf32> to vector<8x32xf32>
    %72 = arith.subf %59, %71 : vector<8x32xf32>
    %cst_35 = arith.constant 9.99999974E-6 : f32
    %73 = vector.broadcast %cst_35 : f32 to vector<8x1xf32>
    %74 = arith.addf %70, %73 : vector<8x1xf32>
    %75 = math.rsqrt %74 : vector<8x1xf32>
    %76 = vector.broadcast %75 : vector<8x1xf32> to vector<8x32xf32>
    %77 = arith.mulf %72, %76 : vector<8x32xf32>
    %78 = vector.broadcast %8 : vector<1x32xf32> to vector<8x32xf32>
    %79 = arith.mulf %77, %78 : vector<8x32xf32>
    %80 = vector.broadcast %9 : vector<1x32xf32> to vector<8x32xf32>
    %81 = arith.addf %79, %80 : vector<8x32xf32>
    %c2 = arith.constant 2 : index
    %c0_36 = arith.constant 0 : index
    %c0_37 = arith.constant 0 : index
    %82 = vector.load %arg4[%c2, %c0_36, %c0_37] : memref<3x32x32xf32, #tpu.memory_space<vmem>>, vector<1x32x32xf32>
    %83 = vector.shape_cast %82 : vector<1x32x32xf32> to vector<32x32xf32>
    %c2_38 = arith.constant 2 : index
    %c0_39 = arith.constant 0 : index
    %c0_40 = arith.constant 0 : index
    %84 = vector.load %arg5[%c2_38, %c0_39, %c0_40] : memref<3x1x32xf32, #tpu.memory_space<vmem>>, vector<1x1x32xf32>
    %85 = vector.shape_cast %84 : vector<1x1x32xf32> to vector<1x32xf32>
    %86 = arith.truncf %81 : vector<8x32xf32> to vector<8x32xbf16>
    %87 = arith.truncf %83 : vector<32x32xf32> to vector<32x32xbf16>
    %cst_41 = arith.constant dense<0.000000e+00> : vector<8x32xf32>
    %88 = tpu.matmul %86, %87, %cst_41 {dimension_numbers = #tpu.dot_dimension_numbers<[1], [0], [0], [1], [0, 0, 1, 1], [], []>} : vector<8x32xbf16>, vector<32x32xbf16>, vector<8x32xf32> -> vector<8x32xf32>
    %89 = vector.broadcast %85 : vector<1x32xf32> to vector<8x32xf32>
    %90 = arith.addf %88, %89 : vector<8x32xf32>
    %cst_42 = arith.constant 0.000000e+00 : f32
    %91 = vector.broadcast %cst_42 : f32 to vector<8x32xf32>
    %92 = arith.cmpf ogt, %90, %91 : vector<8x32xf32>
    %cst_43 = arith.constant 2.000000e-01 : f32
    %93 = vector.broadcast %cst_43 : f32 to vector<8x32xf32>
    %94 = arith.mulf %93, %90 : vector<8x32xf32>
    %95 = arith.select %92, %90, %94 : vector<8x32xi1>, vector<8x32xf32>
    %cst_44 = arith.constant dense<0.000000e+00> : vector<8xf32>
    %96 = vector.multi_reduction <add>, %95, %cst_44 [1] : vector<8x32xf32> to vector<8xf32>
    %97 = vector.shape_cast %96 : vector<8xf32> to vector<8x1xf32>
    %98 = arith.mulf %95, %95 : vector<8x32xf32>
    %cst_45 = arith.constant dense<0.000000e+00> : vector<8xf32>
    %99 = vector.multi_reduction <add>, %98, %cst_45 [1] : vector<8x32xf32> to vector<8xf32>
    %100 = vector.shape_cast %99 : vector<8xf32> to vector<8x1xf32>
    %cst_46 = arith.constant 3.125000e-02 : f32
    %101 = vector.broadcast %cst_46 : f32 to vector<8x1xf32>
    %102 = arith.mulf %97, %101 : vector<8x1xf32>
    %cst_47 = arith.constant 3.125000e-02 : f32
    %103 = vector.broadcast %cst_47 : f32 to vector<8x1xf32>
    %104 = arith.mulf %100, %103 : vector<8x1xf32>
    %105 = arith.mulf %102, %102 : vector<8x1xf32>
    %106 = arith.subf %104, %105 : vector<8x1xf32>
    %107 = vector.broadcast %102 : vector<8x1xf32> to vector<8x32xf32>
    %108 = arith.subf %95, %107 : vector<8x32xf32>
    %cst_48 = arith.constant 9.99999974E-6 : f32
    %109 = vector.broadcast %cst_48 : f32 to vector<8x1xf32>
    %110 = arith.addf %106, %109 : vector<8x1xf32>
    %111 = math.rsqrt %110 : vector<8x1xf32>
    %112 = vector.broadcast %111 : vector<8x1xf32> to vector<8x32xf32>
    %113 = arith.mulf %108, %112 : vector<8x32xf32>
    %114 = vector.broadcast %8 : vector<1x32xf32> to vector<8x32xf32>
    %115 = arith.mulf %113, %114 : vector<8x32xf32>
    %116 = vector.broadcast %9 : vector<1x32xf32> to vector<8x32xf32>
    %117 = arith.addf %115, %116 : vector<8x32xf32>
    %c0_49 = arith.constant 0 : index
    %c0_50 = arith.constant 0 : index
    %118 = vector.load %arg6[%c0_49, %c0_50] : memref<32x128xf32, #tpu.memory_space<vmem>>, vector<32x128xf32>
    %c0_51 = arith.constant 0 : index
    %c0_52 = arith.constant 0 : index
    %119 = vector.load %arg7[%c0_51, %c0_52] : memref<1x128xf32, #tpu.memory_space<vmem>>, vector<1x128xf32>
    %120 = arith.truncf %117 : vector<8x32xf32> to vector<8x32xbf16>
    %121 = arith.truncf %118 : vector<32x128xf32> to vector<32x128xbf16>
    %cst_53 = arith.constant dense<0.000000e+00> : vector<8x128xf32>
    %122 = tpu.matmul %120, %121, %cst_53 {dimension_numbers = #tpu.dot_dimension_numbers<[1], [0], [0], [1], [0, 0, 1, 1], [], []>} : vector<8x32xbf16>, vector<32x128xbf16>, vector<8x128xf32> -> vector<8x128xf32>
    %123 = vector.broadcast %119 : vector<1x128xf32> to vector<8x128xf32>
    %124 = arith.addf %122, %123 : vector<8x128xf32>
    %c0_54 = arith.constant 0 : index
    %c0_55 = arith.constant 0 : index
    %125 = vector.load %arg10[%c0_54, %c0_55] : memref<8x128xf32, #tpu.memory_space<vmem>>, vector<8x128xf32>
    tpu.vector_store %arg10[%c0_54, %c0_55], %124 {strides = array<i32>} : memref<8x128xf32, #tpu.memory_space<vmem>>, vector<8x128xf32>,
    return
  }
  func.func @transform_0(%arg0: i32) -> (i32, i32) {
    %c0_i32 = arith.constant 0 : i32
    %c0_i32_0 = arith.constant 0 : i32
    return %arg0, %c0_i32 : i32, i32
  }
  func.func @transform_1(%arg0: i32) -> (i32, i32) {
    %c0_i32 = arith.constant 0 : i32
    %c0_i32_0 = arith.constant 0 : i32
    %c0_i32_1 = arith.constant 0 : i32
    return %c0_i32, %c0_i32_0 : i32, i32
  }
  func.func @transform_2(%arg0: i32) -> (i32, i32) {
    %c0_i32 = arith.constant 0 : i32
    %c0_i32_0 = arith.constant 0 : i32
    %c0_i32_1 = arith.constant 0 : i32
    return %c0_i32, %c0_i32_0 : i32, i32
  }
  func.func @transform_3(%arg0: i32) -> (i32, i32, i32) {
    %c0_i32 = arith.constant 0 : i32
    %c0_i32_0 = arith.constant 0 : i32
    %c0_i32_1 = arith.constant 0 : i32
    %c0_i32_2 = arith.constant 0 : i32
    return %c0_i32, %c0_i32_0, %c0_i32_1 : i32, i32, i32
  }
  func.func @transform_4(%arg0: i32) -> (i32, i32, i32) {
    %c0_i32 = arith.constant 0 : i32
    %c0_i32_0 = arith.constant 0 : i32
    %c0_i32_1 = arith.constant 0 : i32
    %c0_i32_2 = arith.constant 0 : i32
    return %c0_i32, %c0_i32_0, %c0_i32_1 : i32, i32, i32
  }
  func.func @transform_5(%arg0: i32) -> (i32, i32) {
    %c0_i32 = arith.constant 0 : i32
    %c0_i32_0 = arith.constant 0 : i32
    %c0_i32_1 = arith.constant 0 : i32
    return %c0_i32, %c0_i32_0 : i32, i32
  }
  func.func @transform_6(%arg0: i32) -> (i32, i32) {
    %c0_i32 = arith.constant 0 : i32
    %c0_i32_0 = arith.constant 0 : i32
    %c0_i32_1 = arith.constant 0 : i32
    return %c0_i32, %c0_i32_0 : i32, i32
  }
  func.func @transform_7(%arg0: i32) -> (i32, i32) {
    %c0_i32 = arith.constant 0 : i32
    %c0_i32_0 = arith.constant 0 : i32
    %c0_i32_1 = arith.constant 0 : i32
    return %c0_i32, %c0_i32_0 : i32, i32
  }
  func.func @transform_8(%arg0: i32) -> (i32, i32) {
    %c0_i32 = arith.constant 0 : i32
    %c0_i32_0 = arith.constant 0 : i32
    %c0_i32_1 = arith.constant 0 : i32
    return %c0_i32, %c0_i32_0 : i32, i32
  }
  func.func @transform_9(%arg0: i32) -> (i32, i32) {
    %c0_i32 = arith.constant 0 : i32
    %c0_i32_0 = arith.constant 0 : i32
    return %arg0, %c0_i32 : i32, i32
  }
}

</mosaic_0001>

<llo_original>
// kernel: generate_mix.1
$region0: #{generate_mix.1}
  #allocation0 [shape = 'u32[]', space=smem, size = 0x4, offset = 0x4, fixed_abs, tag = 'smem constant byte address 0x4 - core index']
  #allocation1 [shape = 'u32[144,128]{1,0:T(1,128)}', space=vmem, size = 0x12000, scoped, tag = 'internal scratch']
  %s0 = inlined_call_operand.hbm [shape: f32[16,16], index: 0, kind: input, shape index: {}]
  %s1 = inlined_call_operand.hbm [shape: f32[16,32], index: 1, kind: input, shape index: {}]
  %s2 = inlined_call_operand.vmem [shape: f32[1,32], index: 2, kind: input, shape index: {}]
  %s3 = inlined_call_operand.vmem [shape: f32[3,32,32], index: 3, kind: input, shape index: {}]
  %s4 = inlined_call_operand.vmem [shape: f32[3,1,32], index: 4, kind: input, shape index: {}]
  %s5 = inlined_call_operand.vmem [shape: f32[32,128], index: 5, kind: input, shape index: {}]
  %s6 = inlined_call_operand.vmem [shape: f32[1,128], index: 6, kind: input, shape index: {}]
  %s7 = inlined_call_operand.vmem [shape: f32[1,32], index: 7, kind: input, shape index: {}]
  %s8 = inlined_call_operand.vmem [shape: f32[1,32], index: 8, kind: input, shape index: {}]
  %s9 = inlined_call_operand.vmem [shape: f32[16,128], index: 9, kind: output, shape index: {}]
  %s10 = sld [smem:[#allocation0]]
  $region77: #{generate_mix.1} parent=0
    _
  %s12 = ssub.s32 1, %s10
  %s13 = scalar_select 0, %s12, %s10
  $region1: #{generate_mix.1} parent=0
    #allocation2 [shape = 'u8[8192]{0}', space=vmem, size = 0x2000, scoped, tag = 'input window, operand 0']
    #allocation3 [shape = 's32[2]{0}', space=sflag, size = 0x8, scoped, tag = 'scoped memory for generate_mix.1']
    #allocation4 [shape = 'u8[8192]{0}', space=vmem, size = 0x2000, scoped, tag = 'input window, operand 1, single buffered']
    #allocation5 [shape = 's32[1]{0}', space=sflag, size = 0x4, scoped, tag = 'scoped memory for generate_mix.1']
    %14 = vsyncpa [#allocation3], 0
    %s15 = scalar_lea.sflag [#allocation3], 1
    %16 = vsyncpa %s15, 0
    %17 = vsyncpa [#allocation5], 0
    loop: start=0, step=1, limit=4
    $region2: #{generate_mix.1} parent=1 // loop_pre_header
      _
    $region3: #{generate_mix.1} parent=1 // loop_header
      %s19 = sphi 0, %s23
      %p20 = scmp.ge.s32.totalorder %s19, 4
      %s29 = sphi 0, %s31
      %s32 = sphi 0, %s29
      %s33 = sphi 0, %s32
      %s49 = sphi 0, %s33
      %s53 = sphi 0, %s53
      %s55 = sphi 0, %s53
      %s56 = sphi 0, %s55
      %s70 = sphi 0, %s56
      %s74 = sphi 0, %s74
      %s76 = sphi 0, %s74
      %s77 = sphi 0, %s76
      %s91 = sphi 0, %s77
      %s95 = sphi 0, %s95
      %s97 = sphi 0, %s95
      %s98 = sphi 0, %s97
      %s112 = sphi 0, %s98
      %s116 = sphi 0, %s116
      %s118 = sphi 0, %s116
      %s119 = sphi 0, %s118
      %s133 = sphi 0, %s119
      %s137 = sphi 0, %s137
      %s139 = sphi 0, %s137
      %s140 = sphi 0, %s139
      %s154 = sphi 0, %s140
      %s158 = sphi 0, %s158
      %s160 = sphi 0, %s158
      %s161 = sphi 0, %s160
      %s175 = sphi 0, %s161
      %s179 = sphi 0, %s179
      %s181 = sphi 0, %s179
      %s182 = sphi 0, %s181
      %s196 = sphi 0, %s182
      %s200 = sphi 0, %s200
      %s202 = sphi 0, %s200
      %s203 = sphi 0, %s202
      %s217 = sphi 0, %s203
      %s223 = sphi 0, %s225
      %s226 = sphi 0, %s223
      %s227 = sphi 0, %s226
      %s243 = sphi 0, %s227
    $region4: #{generate_mix.1} parent=1 // loop_header_branch
      %22 = sbr.rel (%p20) target = $region8
    $region5: #{generate_mix.1} parent=1 // loop_body
      %s24 = ssub.s32 %s19, 1
      %s25 = ssub.s32 %s19, 2
      %s26 = sadd.s32 %s19, 1
      %s27 = ssub.s32 %s19, %s26
      %p28 = scmp.eq.s32.totalorder %s27, 0
      %s30 = sadd.s32 %s29, 1
      %s31 = scalar_select %p28, %s29, %s30
      %p34 = pneg %p28
      %p35 = scmp.eq.s32.totalorder %s19, 1
      %p36 = por %p34, %p35
      %p37 = scmp.ne.s32.totalorder %s29, %s32
      %p38 = scmp.eq.s32.totalorder %s19, 0
      %p39 = por %p37, %p38
      %p40 = scmp.ne.s32.totalorder %s29, %s32
      %p41 = scmp.eq.s32.totalorder %s24, 1
      %p42 = por %p40, %p41
      %p43 = scmp.ne.s32.totalorder %s32, %s33
      %p44 = scmp.eq.s32.totalorder %s24, 0
      %p45 = por %p43, %p44
      %p46 = scmp.ne.s32.totalorder %s32, %s33
      %p47 = scmp.eq.s32.totalorder %s25, 1
      %p48 = por %p46, %p47
      %p50 = scmp.ne.s32.totalorder %s33, %s49
      %p51 = scmp.eq.s32.totalorder %s25, 0
      %p52 = por %p50, %p51
      %s54 = sadd.s32 %s53, 1
      %p57 = scmp.eq.s32.totalorder %s19, 1
      %p58 = scmp.ne.s32.totalorder %s53, %s55
      %p59 = scmp.eq.s32.totalorder %s19, 0
      %p60 = por %p58, %p59
      %p61 = scmp.ne.s32.totalorder %s53, %s55
      %p62 = scmp.eq.s32.totalorder %s24, 1
      %p63 = por %p61, %p62
      %p64 = scmp.ne.s32.totalorder %s55, %s56
      %p65 = scmp.eq.s32.totalorder %s24, 0
      %p66 = por %p64, %p65
      %p67 = scmp.ne.s32.totalorder %s55, %s56
      %p68 = scmp.eq.s32.totalorder %s25, 1
      %p69 = por %p67, %p68
      %p71 = scmp.ne.s32.totalorder %s56, %s70
      %p72 = scmp.eq.s32.totalorder %s25, 0
      %p73 = por %p71, %p72
      %s75 = sadd.s32 %s74, 1
      %p78 = scmp.eq.s32.totalorder %s19, 1
      %p79 = scmp.ne.s32.totalorder %s74, %s76
      %p80 = scmp.eq.s32.totalorder %s19, 0
      %p81 = por %p79, %p80
      %p82 = scmp.ne.s32.totalorder %s74, %s76
      %p83 = scmp.eq.s32.totalorder %s24, 1
      %p84 = por %p82, %p83
      %p85 = scmp.ne.s32.totalorder %s76, %s77
      %p86 = scmp.eq.s32.totalorder %s24, 0
      %p87 = por %p85, %p86
      %p88 = scmp.ne.s32.totalorder %s76, %s77
      %p89 = scmp.eq.s32.totalorder %s25, 1
      %p90 = por %p88, %p89
      %p92 = scmp.ne.s32.totalorder %s77, %s91
      %p93 = scmp.eq.s32.totalorder %s25, 0
      %p94 = por %p92, %p93
      %s96 = sadd.s32 %s95, 1
      %p99 = scmp.eq.s32.totalorder %s19, 1
      %p100 = scmp.ne.s32.totalorder %s95, %s97
      %p101 = scmp.eq.s32.totalorder %s19, 0
      %p102 = por %p100, %p101
      %p103 = scmp.ne.s32.totalorder %s95, %s97
      %p104 = scmp.eq.s32.totalorder %s24, 1
      %p105 = por %p103, %p104
      %p106 = scmp.ne.s32.totalorder %s97, %s98
      %p107 = scmp.eq.s32.totalorder %s24, 0
      %p108 = por %p106, %p107
      %p109 = scmp.ne.s32.totalorder %s97, %s98
      %p110 = scmp.eq.s32.totalorder %s25, 1
      %p111 = por %p109, %p110
      %p113 = scmp.ne.s32.totalorder %s98, %s112
      %p114 = scmp.eq.s32.totalorder %s25, 0
      %p115 = por %p113, %p114
      %s117 = sadd.s32 %s116, 1
      %p120 = scmp.eq.s32.totalorder %s19, 1
      %p121 = scmp.ne.s32.totalorder %s116, %s118
      %p122 = scmp.eq.s32.totalorder %s19, 0
      %p123 = por %p121, %p122
      %p124 = scmp.ne.s32.totalorder %s116, %s118
      %p125 = scmp.eq.s32.totalorder %s24, 1
      %p126 = por %p124, %p125
      %p127 = scmp.ne.s32.totalorder %s118, %s119
      %p128 = scmp.eq.s32.totalorder %s24, 0
      %p129 = por %p127, %p128
      %p130 = scmp.ne.s32.totalorder %s118, %s119
      %p131 = scmp.eq.s32.totalorder %s25, 1
      %p132 = por %p130, %p131
      %p134 = scmp.ne.s32.totalorder %s119, %s133
      %p135 = scmp.eq.s32.totalorder %s25, 0
      %p136 = por %p134, %p135
      %s138 = sadd.s32 %s137, 1
      %p141 = scmp.eq.s32.totalorder %s19, 1
      %p142 = scmp.ne.s32.totalorder %s137, %s139
      %p143 = scmp.eq.s32.totalorder %s19, 0
      %p144 = por %p142, %p143
      %p145 = scmp.ne.s32.totalorder %s137, %s139
      %p146 = scmp.eq.s32.totalorder %s24, 1
      %p147 = por %p145, %p146
      %p148 = scmp.ne.s32.totalorder %s139, %s140
      %p149 = scmp.eq.s32.totalorder %s24, 0
      %p150 = por %p148, %p149
      %p151 = scmp.ne.s32.totalorder %s139, %s140
      %p152 = scmp.eq.s32.totalorder %s25, 1
      %p153 = por %p151, %p152
      %p155 = scmp.ne.s32.totalorder %s140, %s154
      %p156 = scmp.eq.s32.totalorder %s25, 0
      %p157 = por %p155, %p156
      %s159 = sadd.s32 %s158, 1
      %p162 = scmp.eq.s32.totalorder %s19, 1
      %p163 = scmp.ne.s32.totalorder %s158, %s160
      %p164 = scmp.eq.s32.totalorder %s19, 0
      %p165 = por %p163, %p164
      %p166 = scmp.ne.s32.totalorder %s158, %s160
      %p167 = scmp.eq.s32.totalorder %s24, 1
      %p168 = por %p166, %p167
      %p169 = scmp.ne.s32.totalorder %s160, %s161
      %p170 = scmp.eq.s32.totalorder %s24, 0
      %p171 = por %p169, %p170
      %p172 = scmp.ne.s32.totalorder %s160, %s161
      %p173 = scmp.eq.s32.totalorder %s25, 1
      %p174 = por %p172, %p173
      %p176 = scmp.ne.s32.totalorder %s161, %s175
      %p177 = scmp.eq.s32.totalorder %s25, 0
      %p178 = por %p176, %p177
      %s180 = sadd.s32 %s179, 1
      %p183 = scmp.eq.s32.totalorder %s19, 1
      %p184 = scmp.ne.s32.totalorder %s179, %s181
      %p185 = scmp.eq.s32.totalorder %s19, 0
      %p186 = por %p184, %p185
      %p187 = scmp.ne.s32.totalorder %s179, %s181
      %p188 = scmp.eq.s32.totalorder %s24, 1
      %p189 = por %p187, %p188
      %p190 = scmp.ne.s32.totalorder %s181, %s182
      %p191 = scmp.eq.s32.totalorder %s24, 0
      %p192 = por %p190, %p191
      %p193 = scmp.ne.s32.totalorder %s181, %s182
      %p194 = scmp.eq.s32.totalorder %s25, 1
      %p195 = por %p193, %p194
      %p197 = scmp.ne.s32.totalorder %s182, %s196
      %p198 = scmp.eq.s32.totalorder %s25, 0
      %p199 = por %p197, %p198
      %s201 = sadd.s32 %s200, 1
      %p204 = scmp.eq.s32.totalorder %s19, 1
      %p205 = scmp.ne.s32.totalorder %s200, %s202
      %p206 = scmp.eq.s32.totalorder %s19, 0
      %p207 = por %p205, %p206
      %p208 = scmp.ne.s32.totalorder %s200, %s202
      %p209 = scmp.eq.s32.totalorder %s24, 1
      %p210 = por %p208, %p209
      %p211 = scmp.ne.s32.totalorder %s202, %s203
      %p212 = scmp.eq.s32.totalorder %s24, 0
      %p213 = por %p211, %p212
      %p214 = scmp.ne.s32.totalorder %s202, %s203
      %p215 = scmp.eq.s32.totalorder %s25, 1
      %p216 = por %p214, %p215
      %p218 = scmp.ne.s32.totalorder %s203, %s217
      %p219 = scmp.eq.s32.totalorder %s25, 0
      %p220 = por %p218, %p219
      %s221 = ssub.s32 %s19, %s26
      %p222 = scmp.eq.s32.totalorder %s221, 0
      %s224 = sadd.s32 %s223, 1
      %s225 = scalar_select %p222, %s223, %s224
      %p228 = pneg %p222
      %p229 = scmp.eq.s32.totalorder %s19, 1
      %p230 = por %p228, %p229
      %p231 = scmp.ne.s32.totalorder %s223, %s226
      %p232 = scmp.eq.s32.totalorder %s19, 0
      %p233 = por %p231, %p232
      %p234 = scmp.ne.s32.totalorder %s223, %s226
      %p235 = scmp.eq.s32.totalorder %s24, 1
      %p236 = por %p234, %p235
      %p237 = scmp.ne.s32.totalorder %s226, %s227
      %p238 = scmp.eq.s32.totalorder %s24, 0
      %p239 = por %p237, %p238
      %p240 = scmp.ne.s32.totalorder %s226, %s227
      %p241 = scmp.eq.s32.totalorder %s25, 1
      %p242 = por %p240, %p241
      %p244 = scmp.ne.s32.totalorder %s227, %s243
      %p245 = scmp.eq.s32.totalorder %s25, 0
      %p246 = por %p244, %p245
      %p247 = scmp.le.s32.totalorder 1, %s19
      %p248 = scmp.lt.s32.totalorder %s19, 3
      %p249 = pnand %p247, %p248
      %p250 = pneg %p249
      // Predicated region
      $region9: #{generate_mix.1} parent=5 // pred_check
        _
      $region10: #{generate_mix.1} parent=5 // pred_check_branch
        %252 = sbr.rel (%p249) target = $region12
      $region11: #{generate_mix.1} parent=5 // pred_region
        %s253 = ssub.s32 %s19, 1
        // Predicated region
        $region13: #{generate_mix.1} parent=11 // pred_check
          %p254 = pneg %p66
        $region14: #{generate_mix.1} parent=11 // pred_check_branch
          %256 = sbr.rel (%p254) target = $region16
        $region15: #{generate_mix.1} parent=11 // pred_region
          %s258 = ssub.s32 256, 256
          %259 = vsyncadd [#allocation5], %s258
          %s260 = sshll.u32 [#allocation4], 4
          %s261 = int_to_ptr.vmem [resolvable:$true] %s260
          %266 = dma.hbm_to_vmem [thread:$0]  %s1, 256, %s261, [#allocation5], 128, 128, 8
        $region16: #{generate_mix.1} parent=11 // pred_fallthru
          _
        // Predicated region
        $region17: #{generate_mix.1} parent=11 // pred_check
          %p267 = pneg %p87
        $region18: #{generate_mix.1} parent=11 // pred_check_branch
          %269 = sbr.rel (%p267) target = $region20
        $region19: #{generate_mix.1} parent=11 // pred_region
          _
        $region20: #{generate_mix.1} parent=11 // pred_fallthru
          _
        // Predicated region
        $region21: #{generate_mix.1} parent=11 // pred_check
          %p270 = pneg %p108
        $region22: #{generate_mix.1} parent=11 // pred_check_branch
          %272 = sbr.rel (%p270) target = $region24
        $region23: #{generate_mix.1} parent=11 // pred_region
          _
        $region24: #{generate_mix.1} parent=11 // pred_fallthru
          _
        // Predicated region
        $region25: #{generate_mix.1} parent=11 // pred_check
          %p273 = pneg %p129
        $region26: #{generate_mix.1} parent=11 // pred_check_branch
          %275 = sbr.rel (%p273) target = $region28
        $region27: #{generate_mix.1} parent=11 // pred_region
          _
        $region28: #{generate_mix.1} parent=11 // pred_fallthru
          _
        // Predicated region
        $region29: #{generate_mix.1} parent=11 // pred_check
          %p276 = pneg %p150
        $region30: #{generate_mix.1} parent=11 // pred_check_branch
          %278 = sbr.rel (%p276) target = $region32
        $region31: #{generate_mix.1} parent=11 // pred_region
          _
        $region32: #{generate_mix.1} parent=11 // pred_fallthru
          _
        // Predicated region
        $region33: #{generate_mix.1} parent=11 // pred_check
          %p279 = pneg %p171
        $region34: #{generate_mix.1} parent=11 // pred_check_branch
          %281 = sbr.rel (%p279) target = $region36
        $region35: #{generate_mix.1} parent=11 // pred_region
          _
        $region36: #{generate_mix.1} parent=11 // pred_fallthru
          _
        // Predicated region
        $region37: #{generate_mix.1} parent=11 // pred_check
          %p282 = pneg %p192
        $region38: #{generate_mix.1} parent=11 // pred_check_branch
          %284 = sbr.rel (%p282) target = $region40
        $region39: #{generate_mix.1} parent=11 // pred_region
          _
        $region40: #{generate_mix.1} parent=11 // pred_fallthru
          _
        // Predicated region
        $region41: #{generate_mix.1} parent=11 // pred_check
          %p285 = pneg %p213
        $region42: #{generate_mix.1} parent=11 // pred_check_branch
          %287 = sbr.rel (%p285) target = $region44
        $region43: #{generate_mix.1} parent=11 // pred_region
          _
        $region44: #{generate_mix.1} parent=11 // pred_fallthru
          _
      $region12: #{generate_mix.1} parent=5 // pred_fallthru
        _
      %p288 = scmp.lt.s32.totalorder %s19, 2
      // Predicated region
      $region45: #{generate_mix.1} parent=5 // pred_check
        %p289 = pneg %p288
      $region46: #{generate_mix.1} parent=5 // pred_check_branch
        %291 = sbr.rel (%p289) target = $region48
      $region47: #{generate_mix.1} parent=5 // pred_region
        // Predicated region
        $region49: #{generate_mix.1} parent=47 // pred_check
          %p292 = pneg %p39
        $region50: #{generate_mix.1} parent=47 // pred_check_branch
          %294 = sbr.rel (%p292) target = $region52
        $region51: #{generate_mix.1} parent=47 // pred_region
          %s295 = sand.u32 %s29, 1
          %s296 = scalar_lea.sflag [#allocation3], %s295
          %s297 = sand.u32 %s29, 1
          %s298 = smul.addr %s297, 8
          %s299 = scalar_lea.vmem [#allocation2], %s298
          %s301 = ssub.s32 128, 128
          %302 = vsyncadd %s296, %s301
          %s303 = smul.addr %s19, 128
          %s304 = scalar_lea.hbm %s0, %s303
          %s306 = sshll.u32 %s299, 4
          %s307 = int_to_ptr.vmem [resolvable:$true] %s306
          %309 = dma.hbm_to_vmem [thread:$0]  %s304, 128, %s307, %s296
        $region52: #{generate_mix.1} parent=47 // pred_fallthru
          _
      $region48: #{generate_mix.1} parent=5 // pred_fallthru
        _
      %p310 = scmp.le.s32.totalorder 1, %s19
      %p311 = scmp.lt.s32.totalorder %s19, 3
      %p312 = pnand %p310, %p311
      %p313 = pneg %p312
      // Predicated region
      $region53: #{generate_mix.1} parent=5 // pred_check
        _
      $region54: #{generate_mix.1} parent=5 // pred_check_branch
        %315 = sbr.rel (%p312) target = $region56
      $region55: #{generate_mix.1} parent=5 // pred_region
        %s316 = ssub.s32 %s19, 1
        %s317 = sand.u32 %s32, 1
        %s318 = scalar_lea.sflag [#allocation3], %s317
        %s319 = sand.u32 %s32, 1
        %s320 = smul.addr %s319, 8
        %s321 = scalar_lea.vmem [#allocation2], %s320
        // Predicated region
        $region57: #{generate_mix.1} parent=55 // pred_check
          %p322 = pneg %p45
        $region58: #{generate_mix.1} parent=55 // pred_check_branch
          %324 = sbr.rel (%p322) target = $region60
        $region59: #{generate_mix.1} parent=55 // pred_region
          %325 = dma.done %s318, 128
        $region60: #{generate_mix.1} parent=55 // pred_fallthru
          _
        // Predicated region
        $region61: #{generate_mix.1} parent=55 // pred_check
          %p326 = pneg %p66
        $region62: #{generate_mix.1} parent=55 // pred_check_branch
          %328 = sbr.rel (%p326) target = $region64
        $region63: #{generate_mix.1} parent=55 // pred_region
          %329 = dma.done [#allocation5], 256
        $region64: #{generate_mix.1} parent=55 // pred_fallthru
          _
        %s330 = sand.u32 %s32, 1
        %s331 = scalar_lea.sflag [#allocation3], %s330
        %s332 = sand.u32 %s32, 1
        %s333 = smul.addr %s332, 8
        %s334 = scalar_lea.vmem [#allocation2], %s333
        %p335 = pneg %p45
        %p336 = pneg %p42
        %p337 = pneg %p66
        %p338 = pneg %p63
        %p339 = pneg %p87
        %p340 = pneg %p84
        %p341 = pneg %p108
        %p342 = pneg %p105
        %p343 = pneg %p129
        %p344 = pneg %p126
        %p345 = pneg %p150
        %p346 = pneg %p147
        %p347 = pneg %p171
        %p348 = pneg %p168
        %p349 = pneg %p192
        %p350 = pneg %p189
        %p351 = pneg %p213
        %p352 = pneg %p210
        %p353 = pneg %p239
        %p354 = pneg %p236
        %p355 = scmp.lt.s32.totalorder %s24, 1
        %s356 = scalar_select %p355, %s24, 1
        %s357 = smul.addr %s356, 8
        %s358 = scalar_lea.vmem %s9, %s357
        %p359 = scmp.lt.s32.totalorder %s24, 1
        %s360 = scalar_select %p359, %s24, 1
        %s361 = smul.addr %s360, 8
        %s362 = scalar_lea.vmem %s9, %s361
        %v364 = vld [vmem:[%s321] sm:$0xff]
        %v365 = vld [vmem:[#allocation4] sm:$0xff]
        %v366 = vld [vmem:[#allocation4 + $0x8] sm:$0xff]
        %v367 = vld [vmem:[%s2] sm:$0x1]
        %v368 = vpack.c.bf16 %v364, %v364
        %v369 = vpack.c.bf16 %v366, %v365
        %v371 = vlaneseq
        %v372 = vshrl.u32 %v371, 7
        %v373 = vsub.s32 0, %v372
        %v374 = vrot.slane %v367, %v373
        %vm376 = vcmask 130048
        %v378 = vsel %vm376, %v368, 0
        %380 = vmatprep.subr.bf16.mxu0 0
        %381 = vmatpush1.bf16.msra.mxu0 %v369
        %382 = vmatprep.subr.bf16.mxu0 0
        %383 = vmatpush1.bf16.msra.mxu0 0
        %384 = vmatprep.subr.bf16.mxu0 0
        %385 = vmatpush1.bf16.msra.mxu0 0
        %386 = vmatprep.subr.bf16.mxu0 0
        %387 = vmatpush1.bf16.msra.mxu0 0
        %388 = vmatprep.subr.bf16.mxu0 0
        %389 = vmatpush1.bf16.msra.mxu0 0
        %390 = vmatprep.subr.bf16.mxu0 0
        %391 = vmatpush1.bf16.msra.mxu0 0
        %392 = vmatprep.subr.bf16.mxu0 0
        %393 = vmatpush1.bf16.msra.mxu0 0
        %394 = vmatprep.subr.bf16.mxu0 0
        %395 = vmatpush1.bf16.msra.mxu0 0
        %396 = vmatprep.subr.bf16.mxu0 0
        %397 = vmatpush1.bf16.msra.mxu0 0
        %398 = vmatprep.subr.bf16.mxu0 0
        %399 = vmatpush1.bf16.msra.mxu0 0
        %400 = vmatprep.subr.bf16.mxu0 0
        %401 = vmatpush1.bf16.msra.mxu0 0
        %402 = vmatprep.subr.bf16.mxu0 0
        %403 = vmatpush1.bf16.msra.mxu0 0
        %404 = vmatprep.subr.bf16.mxu0 0
        %405 = vmatpush1.bf16.msra.mxu0 0
        %406 = vmatprep.subr.bf16.mxu0 0
        %407 = vmatpush1.bf16.msra.mxu0 0
        %408 = vmatprep.subr.bf16.mxu0 0
        %409 = vmatpush1.bf16.msra.mxu0 0
        %410 = vmatprep.subr.bf16.mxu0 0
        %411 = vmatpush1.bf16.msra.mxu0 0
        %412 = vmatprep.mubr.bf16.mxu0 0
        %413 = vmatmul.mubr.bf16.gmra.mrb[0].mxu0 %v378
        %v414 = vpop.f32.mrb[0].mxu0
        %v415 = vadd.f32 %v374, %v414
        %v416 = vpop.f32.mrb[0].mxu0
        %v417 = vpop.f32.mrb[0].mxu0
        %v418 = vpop.f32.mrb[0].mxu0
        %419 = vdwg.mxu0
        %v420 = vld [vmem:[%s7] sm:$0x1]
        %v421 = vld [vmem:[%s8] sm:$0x1]
        %v422 = vld [vmem:[%s3] sm:$0xff]
        %v423 = vld [vmem:[%s3 + $0x8] sm:$0xff]
        %v424 = vld [vmem:[%s3 + $0x10] sm:$0xff]
        %v425 = vld [vmem:[%s3 + $0x18] sm:$0xff]
        %v426 = vld [vmem:[%s4] sm:$0x1]
        %v427 = vpack.c.bf16 %v415, %v415
        %v428 = vpack.c.bf16 %v423, %v422
        %v429 = vpack.c.bf16 %v425, %v424
        %v431 = vlaneseq
        %v432 = vshrl.u32 %v431, 7
        %v433 = vsub.s32 0, %v432
        %v434 = vrot.slane %v426, %v433
        %vm436 = vcmask 261120
        %v438 = vsel %vm436, %v427, 0
        %440 = vmatprep.subr.bf16.mxu0 0
        %441 = vmatpush1.bf16.msra.mxu0 %v428
        %442 = vmatprep.subr.bf16.mxu0 0
        %443 = vmatpush1.bf16.msra.mxu0 %v429
        %444 = vmatprep.subr.bf16.mxu0 0
        %445 = vmatpush1.bf16.msra.mxu0 0
        %446 = vmatprep.subr.bf16.mxu0 0
        %447 = vmatpush1.bf16.msra.mxu0 0
        %448 = vmatprep.subr.bf16.mxu0 0
        %449 = vmatpush1.bf16.msra.mxu0 0
        %450 = vmatprep.subr.bf16.mxu0 0
        %451 = vmatpush1.bf16.msra.mxu0 0
        %452 = vmatprep.subr.bf16.mxu0 0
        %453 = vmatpush1.bf16.msra.mxu0 0
        %454 = vmatprep.subr.bf16.mxu0 0
        %455 = vmatpush1.bf16.msra.mxu0 0
        %456 = vmatprep.subr.bf16.mxu0 0
        %457 = vmatpush1.bf16.msra.mxu0 0
        %458 = vmatprep.subr.bf16.mxu0 0
        %459 = vmatpush1.bf16.msra.mxu0 0
        %460 = vmatprep.subr.bf16.mxu0 0
        %461 = vmatpush1.bf16.msra.mxu0 0
        %462 = vmatprep.subr.bf16.mxu0 0
        %463 = vmatpush1.bf16.msra.mxu0 0
        %464 = vmatprep.subr.bf16.mxu0 0
        %465 = vmatpush1.bf16.msra.mxu0 0
        %466 = vmatprep.subr.bf16.mxu0 0
        %467 = vmatpush1.bf16.msra.mxu0 0
        %468 = vmatprep.subr.bf16.mxu0 0
        %469 = vmatpush1.bf16.msra.mxu0 0
        %470 = vmatprep.subr.bf16.mxu0 0
        %471 = vmatpush1.bf16.msra.mxu0 0
        %472 = vmatprep.mubr.bf16.mxu0 0
        %473 = vmatmul.mubr.bf16.gmra.mrb[0].mxu0 %v438
        %v474 = vpop.f32.mrb[0].mxu0
        %v475 = vadd.f32 %v434, %v474
        %v476 = vpop.f32.mrb[0].mxu0
        %v477 = vpop.f32.mrb[0].mxu0
        %v478 = vpop.f32.mrb[0].mxu0
        %479 = vdwg.mxu0
        %vm480 = vcmp.gt.f32.partialorder %v475, 0.0
        %v481 = vmul.f32 %v475, 0.2
        %v482 = vsel %vm480, %v475, %v481
        %v483 = vsel %vm436, %v482, 0.0
        %484 = vadd.xlane.f32.xlu0 %v483
        %v485 = vpop.xlane.xlu0 %484
        %v486 = vmul.f32 %v482, %v482
        %v487 = vsel %vm436, %v486, 0.0
        %488 = vadd.xlane.f32.xlu0 %v487
        %v489 = vpop.xlane.xlu0 %488
        %v490 = vmul.f32 %v485, 0.03125
        %v491 = vmul.f32 %v489, 0.03125
        %v492 = vmul.f32 %v490, %v490
        %v493 = vsub.f32 %v491, %v492
        %v494 = vsub.f32 %v482, %v490
        %v495 = vadd.f32 %v493, 1e-05
        %v496 = vrsqrt.pop %v495
        %v497 = vmul.f32 %v494, %v496
        %v499 = vlaneseq
        %v500 = vshrl.u32 %v499, 7
        %v501 = vsub.s32 0, %v500
        %v502 = vrot.slane %v420, %v501
        %v504 = vmul.f32 %v497, %v502
        %v506 = vlaneseq
        %v507 = vshrl.u32 %v506, 7
        %v508 = vsub.s32 0, %v507
        %v509 = vrot.slane %v421, %v508
        %v511 = vadd.f32 %v504, %v509
        %s512 = scalar_lea.vmem %s3, 32
        %v513 = vld [vmem:[%s512] sm:$0xff]
        %v514 = vld [vmem:[%s512 + $0x8] sm:$0xff]
        %v515 = vld [vmem:[%s512 + $0x10] sm:$0xff]
        %v516 = vld [vmem:[%s512 + $0x18] sm:$0xff]
        %s517 = scalar_lea.vmem %s4, 1
        %v518 = vld [vmem:[%s517] sm:$0x1]
        %v519 = vpack.c.bf16 %v511, %v511
        %v520 = vpack.c.bf16 %v514, %v513
        %v521 = vpack.c.bf16 %v516, %v515
        %v523 = vlaneseq
        %v524 = vshrl.u32 %v523, 7
        %v525 = vsub.s32 0, %v524
        %v526 = vrot.slane %v518, %v525
        %v529 = vsel %vm436, %v519, 0
        %531 = vmatprep.subr.bf16.mxu0 0
        %532 = vmatpush1.bf16.msra.mxu0 %v520
        %533 = vmatprep.subr.bf16.mxu0 0
        %534 = vmatpush1.bf16.msra.mxu0 %v521
        %535 = vmatprep.subr.bf16.mxu0 0
        %536 = vmatpush1.bf16.msra.mxu0 0
        %537 = vmatprep.subr.bf16.mxu0 0
        %538 = vmatpush1.bf16.msra.mxu0 0
        %539 = vmatprep.subr.bf16.mxu0 0
        %540 = vmatpush1.bf16.msra.mxu0 0
        %541 = vmatprep.subr.bf16.mxu0 0
        %542 = vmatpush1.bf16.msra.mxu0 0
        %543 = vmatprep.subr.bf16.mxu0 0
        %544 = vmatpush1.bf16.msra.mxu0 0
        %545 = vmatprep.subr.bf16.mxu0 0
        %546 = vmatpush1.bf16.msra.mxu0 0
        %547 = vmatprep.subr.bf16.mxu0 0
        %548 = vmatpush1.bf16.msra.mxu0 0
        %549 = vmatprep.subr.bf16.mxu0 0
        %550 = vmatpush1.bf16.msra.mxu0 0
        %551 = vmatprep.subr.bf16.mxu0 0
        %552 = vmatpush1.bf16.msra.mxu0 0
        %553 = vmatprep.subr.bf16.mxu0 0
        %554 = vmatpush1.bf16.msra.mxu0 0
        %555 = vmatprep.subr.bf16.mxu0 0
        %556 = vmatpush1.bf16.msra.mxu0 0
        %557 = vmatprep.subr.bf16.mxu0 0
        %558 = vmatpush1.bf16.msra.mxu0 0
        %559 = vmatprep.subr.bf16.mxu0 0
        %560 = vmatpush1.bf16.msra.mxu0 0
        %561 = vmatprep.subr.bf16.mxu0 0
        %562 = vmatpush1.bf16.msra.mxu0 0
        %563 = vmatprep.mubr.bf16.mxu0 0
        %564 = vmatmul.mubr.bf16.gmra.mrb[0].mxu0 %v529
        %v565 = vpop.f32.mrb[0].mxu0
        %v566 = vadd.f32 %v526, %v565
        %v567 = vpop.f32.mrb[0].mxu0
        %v568 = vpop.f32.mrb[0].mxu0
        %v569 = vpop.f32.mrb[0].mxu0
        %570 = vdwg.mxu0
        %vm571 = vcmp.gt.f32.partialorder %v566, 0.0
        %v572 = vmul.f32 %v566, 0.2
        %v573 = vsel %vm571, %v566, %v572
        %v574 = vsel %vm436, %v573, 0.0
        %575 = vadd.xlane.f32.xlu0 %v574
        %v576 = vpop.xlane.xlu0 %575
        %v577 = vmul.f32 %v573, %v573
        %v578 = vsel %vm436, %v577, 0.0
        %579 = vadd.xlane.f32.xlu0 %v578
        %v580 = vpop.xlane.xlu0 %579
        %v581 = vmul.f32 %v576, 0.03125
        %v582 = vmul.f32 %v580, 0.03125
        %v583 = vmul.f32 %v581, %v581
        %v584 = vsub.f32 %v582, %v583
        %v585 = vsub.f32 %v573, %v581
        %v586 = vadd.f32 %v584, 1e-05
        %v587 = vrsqrt.pop %v586
        %v588 = vmul.f32 %v585, %v587
        %v589 = vmul.f32 %v588, %v502
        %v590 = vadd.f32 %v589, %v509
        %s591 = scalar_lea.vmem %s3, 64
        %v592 = vld [vmem:[%s591] sm:$0xff]
        %v593 = vld [vmem:[%s591 + $0x8] sm:$0xff]
        %v594 = vld [vmem:[%s591 + $0x10] sm:$0xff]
        %v595 = vld [vmem:[%s591 + $0x18] sm:$0xff]
        %s596 = scalar_lea.vmem %s4, 2
        %v597 = vld [vmem:[%s596] sm:$0x1]
        %v598 = vpack.c.bf16 %v590, %v590
        %v599 = vpack.c.bf16 %v593, %v592
        %v600 = vpack.c.bf16 %v595, %v594
        %v602 = vlaneseq
        %v603 = vshrl.u32 %v602, 7
        %v604 = vsub.s32 0, %v603
        %v605 = vrot.slane %v597, %v604
        %v608 = vsel %vm436, %v598, 0
        %610 = vmatprep.subr.bf16.mxu0 0
        %611 = vmatpush1.bf16.msra.mxu0 %v599
        %612 = vmatprep.subr.bf16.mxu0 0
        %613 = vmatpush1.bf16.msra.mxu0 %v600
        %614 = vmatprep.subr.bf16.mxu0 0
        %615 = vmatpush1.bf16.msra.mxu0 0
        %616 = vmatprep.subr.bf16.mxu0 0
        %617 = vmatpush1.bf16.msra.mxu0 0
        %618 = vmatprep.subr.bf16.mxu0 0
        %619 = vmatpush1.bf16.msra.mxu0 0
        %620 = vmatprep.subr.bf16.mxu0 0
        %621 = vmatpush1.bf16.msra.mxu0 0
        %622 = vmatprep.subr.bf16.mxu0 0
        %623 = vmatpush1.bf16.msra.mxu0 0
        %624 = vmatprep.subr.bf16.mxu0 0
        %625 = vmatpush1.bf16.msra.mxu0 0
        %626 = vmatprep.subr.bf16.mxu0 0
        %627 = vmatpush1.bf16.msra.mxu0 0
        %628 = vmatprep.subr.bf16.mxu0 0
        %629 = vmatpush1.bf16.msra.mxu0 0
        %630 = vmatprep.subr.bf16.mxu0 0
        %631 = vmatpush1.bf16.msra.mxu0 0
        %632 = vmatprep.subr.bf16.mxu0 0
        %633 = vmatpush1.bf16.msra.mxu0 0
        %634 = vmatprep.subr.bf16.mxu0 0
        %635 = vmatpush1.bf16.msra.mxu0 0
        %636 = vmatprep.subr.bf16.mxu0 0
        %637 = vmatpush1.bf16.msra.mxu0 0
        %638 = vmatprep.subr.bf16.mxu0 0
        %639 = vmatpush1.bf16.msra.mxu0 0
        %640 = vmatprep.subr.bf16.mxu0 0
        %641 = vmatpush1.bf16.msra.mxu0 0
        %642 = vmatprep.mubr.bf16.mxu0 0
        %643 = vmatmul.mubr.bf16.gmra.mrb[0].mxu0 %v608
        %v644 = vpop.f32.mrb[0].mxu0
        %v645 = vadd.f32 %v605, %v644
        %v646 = vpop.f32.mrb[0].mxu0
        %v647 = vpop.f32.mrb[0].mxu0
        %v648 = vpop.f32.mrb[0].mxu0
        %649 = vdwg.mxu0
        %vm650 = vcmp.gt.f32.partialorder %v645, 0.0
        %v651 = vmul.f32 %v645, 0.2
        %v652 = vsel %vm650, %v645, %v651
        %v653 = vsel %vm436, %v652, 0.0
        %654 = vadd.xlane.f32.xlu0 %v653
        %v655 = vpop.xlane.xlu0 %654
        %v656 = vmul.f32 %v652, %v652
        %v657 = vsel %vm436, %v656, 0.0
        %658 = vadd.xlane.f32.xlu0 %v657
        %v659 = vpop.xlane.xlu0 %658
        %v660 = vmul.f32 %v655, 0.03125
        %v661 = vmul.f32 %v659, 0.03125
        %v662 = vmul.f32 %v660, %v660
        %v663 = vsub.f32 %v661, %v662
        %v664 = vsub.f32 %v652, %v660
        %v665 = vadd.f32 %v663, 1e-05
        %v666 = vrsqrt.pop %v665
        %v667 = vmul.f32 %v664, %v666
        %v668 = vmul.f32 %v667, %v502
        %v669 = vadd.f32 %v668, %v509
        %v670 = vld [vmem:[%s5] sm:$0xff]
        %v671 = vld [vmem:[%s5 + $0x8] sm:$0xff]
        %v672 = vld [vmem:[%s5 + $0x10] sm:$0xff]
        %v673 = vld [vmem:[%s5 + $0x18] sm:$0xff]
        %v674 = vld [vmem:[%s6] sm:$0x1]
        %v675 = vpack.c.bf16 %v669, %v669
        %v676 = vpack.c.bf16 %v671, %v670
        %v677 = vpack.c.bf16 %v673, %v672
        %v679 = vlaneseq
        %v680 = vshrl.u32 %v679, 7
        %v681 = vsub.s32 0, %v680
        %v682 = vrot.slane %v674, %v681
        %v685 = vsel %vm436, %v675, 0
        %687 = vmatprep.subr.bf16.mxu0 0
        %688 = vmatpush1.bf16.msra.mxu0 %v676
        %689 = vmatprep.subr.bf16.mxu0 0
        %690 = vmatpush1.bf16.msra.mxu0 %v677
        %691 = vmatprep.subr.bf16.mxu0 0
        %692 = vmatpush1.bf16.msra.mxu0 0
        %693 = vmatprep.subr.bf16.mxu0 0
        %694 = vmatpush1.bf16.msra.mxu0 0
        %695 = vmatprep.subr.bf16.mxu0 0
        %696 = vmatpush1.bf16.msra.mxu0 0
        %697 = vmatprep.subr.bf16.mxu0 0
        %698 = vmatpush1.bf16.msra.mxu0 0
        %699 = vmatprep.subr.bf16.mxu0 0
        %700 = vmatpush1.bf16.msra.mxu0 0
        %701 = vmatprep.subr.bf16.mxu0 0
        %702 = vmatpush1.bf16.msra.mxu0 0
        %703 = vmatprep.subr.bf16.mxu0 0
        %704 = vmatpush1.bf16.msra.mxu0 0
        %705 = vmatprep.subr.bf16.mxu0 0
        %706 = vmatpush1.bf16.msra.mxu0 0
        %707 = vmatprep.subr.bf16.mxu0 0
        %708 = vmatpush1.bf16.msra.mxu0 0
        %709 = vmatprep.subr.bf16.mxu0 0
        %710 = vmatpush1.bf16.msra.mxu0 0
        %711 = vmatprep.subr.bf16.mxu0 0
        %712 = vmatpush1.bf16.msra.mxu0 0
        %713 = vmatprep.subr.bf16.mxu0 0
        %714 = vmatpush1.bf16.msra.mxu0 0
        %715 = vmatprep.subr.bf16.mxu0 0
        %716 = vmatpush1.bf16.msra.mxu0 0
        %717 = vmatprep.subr.bf16.mxu0 0
        %718 = vmatpush1.bf16.msra.mxu0 0
        %719 = vmatprep.mubr.bf16.mxu0 0
        %720 = vmatmul.mubr.bf16.gmra.mrb[0].mxu0 %v685
        %v721 = vpop.f32.mrb[0].mxu0
        %v722 = vadd.f32 %v682, %v721
        %v723 = vpop.f32.mrb[0].mxu0
        %v724 = vpop.f32.mrb[0].mxu0
        %v725 = vpop.f32.mrb[0].mxu0
        %726 = vdwg.mxu0
        %727 = vst [vmem:[%s362] sm:$0xff] %v722
        %p728 = scmp.lt.s32.totalorder %s24, 1
        %s729 = scalar_select %p728, %s24, 1
        %s730 = smul.addr %s729, 8
        %s731 = scalar_lea.vmem %s9, %s730
        // Predicated region
        $region65: #{generate_mix.1} parent=55 // pred_check
          %p732 = pneg %p236
        $region66: #{generate_mix.1} parent=55 // pred_check_branch
          %734 = sbr.rel (%p732) target = $region68
        $region67: #{generate_mix.1} parent=55 // pred_region
          _
        $region68: #{generate_mix.1} parent=55 // pred_fallthru
          _
      $region56: #{generate_mix.1} parent=5 // pred_fallthru
        _
      %p735 = scmp.le.s32.totalorder 2, %s19
      // Predicated region
      $region69: #{generate_mix.1} parent=5 // pred_check
        %p736 = pneg %p735
      $region70: #{generate_mix.1} parent=5 // pred_check_branch
        %738 = sbr.rel (%p736) target = $region72
      $region71: #{generate_mix.1} parent=5 // pred_region
        %s739 = ssub.s32 %s19, 2
        // Predicated region
        $region73: #{generate_mix.1} parent=71 // pred_check
          %p740 = pneg %p242
        $region74: #{generate_mix.1} parent=71 // pred_check_branch
          %742 = sbr.rel (%p740) target = $region76
        $region75: #{generate_mix.1} parent=71 // pred_region
          %p743 = scmp.lt.s32.totalorder %s25, 1
          %s744 = scalar_select %p743, %s25, 1
          %s745 = smul.addr %s744, 8
          %s746 = scalar_lea.vmem %s9, %s745
        $region76: #{generate_mix.1} parent=71 // pred_fallthru
          _
      $region72: #{generate_mix.1} parent=5 // pred_fallthru
        _
    $region6: #{generate_mix.1} parent=1 // loop_footer
      %s23 = sadd.s32 1, %s19
    $region7: #{generate_mix.1} parent=1 // loop_footer_branch
      %18 = sbr.rel target = $region3
    $region8: #{generate_mix.1} parent=1 // loop_exit
      _
    %747 = vsyncpa [#allocation3], 1
    %s748 = scalar_lea.sflag [#allocation3], 1
    %749 = vsyncpa %s748, 1
    %750 = vsyncpa [#allocation5], 1

</llo_original>
